<compile_context>
chip_gen: v6e
topology: v6e:2x2x1
jax: 0.10.0
libtpu: 0.0.40
codegen_flags: <defaults>
</compile_context>

<pallas_src>
import functools
import numpy as np
import jax
import jax.numpy as jnp
from jax.experimental import pallas as pl
from jax.experimental.pallas import tpu as pltpu


# ---------------------------------------------------------------------------
# Parameter / positional-embedding construction (glue, deterministic init)
# ---------------------------------------------------------------------------
def make_pos_embedding(input_ft, num_fourier_bases, key):
    """Mirror of PositionEmbedding._make_pos_embedding_tensor (without batch dim)."""
    F, T = input_ft
    f = np.linspace(-1.0, 1.0, F)
    t = np.linspace(-1.0, 1.0, T)
    grid = np.stack(np.meshgrid(f, t, indexing="ij"), axis=-1).astype(np.float32)  # (F, T, 2)
    projection = jax.random.normal(key, (2, num_fourier_bases), dtype=jnp.float32)
    pe = jnp.pi * jnp.matmul(jnp.asarray(grid), projection)                        # (F, T, nfb)
    pe = jnp.concatenate([jnp.sin(pe), jnp.sin(pe + 0.5 * jnp.pi)], axis=-1)        # (F, T, 2*nfb)
    return pe


def init_params(key, slot_dim, num_fourier_bases, dec_mlp_hid_dim, out_dim):
    """6 linear layers: in -> hid (x5, ReLU) -> out.  Deterministic uniform init."""
    d_in = slot_dim + 2 * num_fourier_bases
    dims = [d_in] + [dec_mlp_hid_dim] * 5 + [out_dim]
    keys = jax.random.split(key, len(dims) - 1)
    params = []
    for k, di, do in zip(keys, dims[:-1], dims[1:]):
        kw, kb = jax.random.split(k)
        bound = 1.0 / np.sqrt(di)
        W = jax.random.uniform(kw, (di, do), minval=-bound, maxval=bound, dtype=jnp.float32)
        b = jax.random.uniform(kb, (1, do), minval=-bound, maxval=bound, dtype=jnp.float32)
        params.append((W, b))
    return params


# ---------------------------------------------------------------------------
# Pallas kernel: fused 6-layer MLP over a feature-major tile of rows
# ---------------------------------------------------------------------------
def _decoder_mlp_kernel(x_ref, pe1_ref, w1xt_ref, wht_ref, bht_ref, wlt_ref, blt_ref,
                        o_ref, *, k, ft):
    # Layer 1 (split):  relu( W1[:S]^T @ x  +  (W1[S:]^T @ pe + b1) )
    # x_ref: (S, R), w1xt_ref: (hid, S)  ->  h: (hid, R), lane-dense in rows.
    h = jnp.dot(w1xt_ref[...], x_ref[...], preferred_element_type=jnp.float32)
    pe = pe1_ref[...]                                      # (hid, FT), f32, incl. b1
    if k == 1:
        h = jnp.maximum(h + pe, 0.0)
    else:
        # pe is periodic with period FT along the row axis; apply per chunk so we
        # never materialize a k*FT-wide bias in HBM or keep it resident in VMEM.
        h = jnp.concatenate(
            [jnp.maximum(h[:, j * ft:(j + 1) * ft] + pe, 0.0) for j in range(k)],
            axis=1)

    cdt = wht_ref.dtype
    # Hidden layers 2..5: (hid, hid) @ (hid, R) + (hid, 1), static unrolled.
    for i in range(wht_ref.shape[0]):
        h = jnp.dot(wht_ref[i], h.astype(cdt), preferred_element_type=jnp.float32)
        h = jnp.maximum(h + bht_ref[i], 0.0)

    # Final layer: plain NN matmul, already in the (out_dim, R) lane-dense layout.
    out = jnp.dot(wlt_ref[...], h.astype(cdt),
                  preferred_element_type=jnp.float32) + blt_ref[...]
    o_ref[...] = out.astype(o_ref.dtype)


def as_decoder_forward(x, pos_embedding, params, *, compute_dtype=jnp.float32,
                       max_rows_per_tile=None):
    """x: (B, F, T, slot_dim) float32.  Returns (B, F, T, channels) (squeezed if 1)."""
    B, F, T, S = x.shape
    FT = F * T
    N = B * FT
    hid = params[0][0].shape[1]
    out_dim = params[-1][0].shape[1]
    cdt = compute_dtype
    itemsize = jnp.dtype(cdt).itemsize

    # ---- split layer 1: pe contribution (incl. b1) precomputed once, feature-major ----
    W1, b1 = params[0]
    W1xT = W1[:S, :].T.astype(cdt)                          # (hid, S)
    pe_flat = pos_embedding.reshape(FT, -1)
    pe1T = (pe_flat @ W1[S:, :] + b1).T.astype(jnp.float32)  # (hid, FT)

    # ---- stacked, pre-transposed hidden layers; pre-transposed last layer ----
    WhT = jnp.stack([params[i][0].T for i in range(1, 5)]).astype(cdt)        # (4, hid, hid)
    bhT = jnp.stack([params[i][1].reshape(hid, 1) for i in range(1, 5)])      # (4, hid, 1) f32
    Wl, bl = params[5]
    WlT = Wl.T.astype(cdt)                                   # (out_dim, hid)
    blT = bl.reshape(out_dim, 1).astype(jnp.float32)         # (out_dim, 1)

    # ---- feature-major x: (S, N), rows ordered (b, f, t) to match pe periodicity ----
    x2 = x.reshape(N, S).T.astype(cdt)

    # ---- generation-aware row tiling: R = k*FT, k | B, derived from a VMEM budget ----
    def footprint_bytes(k_):
        R_ = k_ * FT
        b = 0
        b += 2 * max(S, 8) * R_ * itemsize          # x tile (double buffered)
        b += 2 * max(out_dim, 8) * R_ * 4           # out tile
        b += 2 * hid * R_ * 4                       # live f32 h intermediates
        b += 2 * hid * max(FT, 128) * 4             # pe1 (resident, 2 bufs allocated)
        b += 2 * 4 * hid * hid * itemsize           # stacked hidden W
        b += 2 * hid * 128 * itemsize               # W1xT (lane-padded)
        b += 2 * 4 * hid * 128 * 4                  # stacked hidden b (lane-padded)
        b += 2 * max(out_dim, 8) * hid * itemsize   # last W
        b += 2 * 8 * 128 * 4                        # last b
        return b

    try:
        kind = jax.devices()[0].device_kind.lower()
    except Exception:  # pragma: no cover - be conservative if query fails
        kind = ""
    is_v7 = ("v7" in kind) or ("7x" in kind)
    budget = (40 if is_v7 else 96) * (1 << 20)      # v7x: 64 MiB VMEM; v5e/v6e: 128 MiB

    k = 1
    for cand in range(1, B + 1):                    # divisors of B, increasing
        if B % cand:
            continue
        if max_rows_per_tile is not None and cand * FT > max_rows_per_tile:
            continue
        if footprint_bytes(cand) <= budget:
            k = cand
    if B >= 2 and k > B // 2:                       # keep >= 2 grid tiles for v7x megacore
        for cand in range(B // 2, 0, -1):
            if B % cand == 0:
                k = cand
                break
    R = k * FT
    num_tiles = B // k
    assert R % 8 == 0, "rows-per-tile must be sublane aligned"
    assert R % 128 == 0 or num_tiles == 1, \
        "lane-dense tiling needs rows-per-tile % 128 == 0"
    # TODO(synk): ragged F*T (not a multiple of 128) with B > k would need a masked
    #             tail store; and B == 1 could be split along sub-F*T chunks so the
    #             second v7x TensorCore is not idle.

    vmem_cap = (60 if is_v7 else 110) * (1 << 20)
    vmem_limit = int(min(vmem_cap, max(footprint_bytes(k) + (2 << 20), 24 << 20)))

    flops = 2 * N * (S * hid + 4 * hid * hid + hid * out_dim)
    bytes_accessed = int(
        x2.size * itemsize + pe1T.size * 4 + WhT.size * itemsize + W1xT.size * itemsize
        + bhT.size * 4 + WlT.size * itemsize + blT.size * 4 + out_dim * N * 4)
    cost = pl.CostEstimate(flops=int(flops), transcendentals=0,
                           bytes_accessed=bytes_accessed)

    kernel = functools.partial(_decoder_mlp_kernel, k=k, ft=FT)

    out_t = pl.pallas_call(
        kernel,
        out_shape=jax.ShapeDtypeStruct((out_dim, N), x.dtype),
        grid_spec=pltpu.PrefetchScalarGridSpec(
            num_scalar_prefetch=0,
            grid=(num_tiles,),
            in_specs=[
                pl.BlockSpec((S, R), lambda i: (0, i)),            # x (feature-major)
                pl.BlockSpec((hid, FT), lambda i: (0, 0)),         # pe1 bias (resident)
                pl.BlockSpec((hid, S), lambda i: (0, 0)),          # W1[:S]^T
                pl.BlockSpec((4, hid, hid), lambda i: (0, 0, 0)),  # stacked hidden W^T
                pl.BlockSpec((4, hid, 1), lambda i: (0, 0, 0)),    # stacked hidden b
                pl.BlockSpec((out_dim, hid), lambda i: (0, 0)),    # last W^T
                pl.BlockSpec((out_dim, 1), lambda i: (0, 0)),      # last b
            ],
            out_specs=pl.BlockSpec((out_dim, R), lambda i: (0, i)),
        ),
        compiler_params=pltpu.CompilerParams(
            dimension_semantics=("parallel",),
            vmem_limit_bytes=vmem_limit),
        cost_estimate=cost,
    )(x2, pe1T, W1xT, WhT, bhT, WlT, blT)

    out = jnp.moveaxis(out_t.reshape(out_dim, B, F, T), 0, -1)     # (B, F, T, out_dim)
    if out_dim == 1:
        out = out.squeeze(-1)   # matches torch .squeeze(-1) semantics
    return out


# ---------------------------------------------------------------------------
# Pure-JAX reference (original math: broadcast + concat + unsplit layer 1)
# ---------------------------------------------------------------------------
def reference(x, pos_embedding, params):
    B, F, T, S = x.shape
    pe = jnp.broadcast_to(pos_embedding[None], (B, F, T, pos_embedding.shape[-1]))
    h = jnp.concatenate([x, pe], axis=-1)
    for W, b in params[:-1]:
        h = jnp.maximum(h @ W + b, 0.0)
    Wl, bl = params[-1]
    out = h @ Wl + bl
    return out.squeeze(-1) if out.shape[-1] == 1 else out


if __name__ == "__main__":
    key = jax.random.PRNGKey(0)
    k_pos, k_par, k_x = jax.random.split(key, 3)

    # small config consistent with the module's __init__
    B, slot_dim, num_fourier_bases = 2, 8, 3
    F, T = 16, 16                # input_ft
    dec_mlp_hid_dim = 32
    channels = 2                 # cac=False -> last layer out = channels

    pos_emb = make_pos_embedding((F, T), num_fourier_bases, k_pos)
    params = init_params(k_par, slot_dim, num_fourier_bases, dec_mlp_hid_dim, channels)
    x = jax.random.normal(k_x, (B, F, T, slot_dim), dtype=jnp.float32)

    out = as_decoder_forward(x, pos_emb, params)
    out = jax.block_until_ready(out)

    ref = reference(x, pos_emb, params)
    assert out.shape == (B, F, T, channels), out.shape
    np.testing.assert_allclose(np.asarray(out), np.asarray(ref), rtol=1e-4, atol=1e-5)
    print("KERNEL_OK")
</pallas_src>

<mosaic_0001>
module attributes {stable_mosaic.version = 11 : i64} {
  func.func @_decoder_mlp_kernel(%arg0: i32, %arg1: memref<8x256xf32, #tpu.memory_space<vmem>>, %arg2: memref<32x256xf32, #tpu.memory_space<vmem>>, %arg3: memref<32x8xf32, #tpu.memory_space<vmem>>, %arg4: memref<4x32x32xf32, #tpu.memory_space<vmem>>, %arg5: memref<4x32x1xf32, #tpu.memory_space<vmem>>, %arg6: memref<2x32xf32, #tpu.memory_space<vmem>>, %arg7: memref<2x1xf32, #tpu.memory_space<vmem>>, %arg8: memref<2x256xf32, #tpu.memory_space<vmem>>) attributes {dimension_semantics = [#tpu.dimension_semantics<parallel>], iteration_bounds = array<i64: 2>, scalar_prefetch = 0 : i64, scratch_operands = 0 : i64, tpu.core_type = #tpu.core_type<tc>, window_params = [{transform_indices = @transform_0, window_bounds = array<i64: 8, 256>}, {pipeline_mode = #tpu.pipeline_mode<synchronous>, transform_indices = @transform_1, window_bounds = array<i64: 32, 256>}, {pipeline_mode = #tpu.pipeline_mode<synchronous>, transform_indices = @transform_2, window_bounds = array<i64: 32, 8>}, {pipeline_mode = #tpu.pipeline_mode<synchronous>, transform_indices = @transform_3, window_bounds = array<i64: 4, 32, 32>}, {pipeline_mode = #tpu.pipeline_mode<synchronous>, transform_indices = @transform_4, window_bounds = array<i64: 4, 32, 1>}, {pipeline_mode = #tpu.pipeline_mode<synchronous>, transform_indices = @transform_5, window_bounds = array<i64: 2, 32>}, {pipeline_mode = #tpu.pipeline_mode<synchronous>, transform_indices = @transform_6, window_bounds = array<i64: 2, 1>}, {transform_indices = @transform_7, window_bounds = array<i64: 2, 256>}]} {
    %c0 = arith.constant 0 : index
    %c0_0 = arith.constant 0 : index
    %0 = vector.load %arg3[%c0, %c0_0] : memref<32x8xf32, #tpu.memory_space<vmem>>, vector<32x8xf32>
    %c0_1 = arith.constant 0 : index
    %c0_2 = arith.constant 0 : index
    %1 = vector.load %arg1[%c0_1, %c0_2] : memref<8x256xf32, #tpu.memory_space<vmem>>, vector<8x256xf32>
    %cst = arith.constant dense<0.000000e+00> : vector<32x256xf32>
    %2 = tpu.matmul %0, %1, %cst {dimension_numbers = #tpu.dot_dimension_numbers<[1], [0], [0], [1], [0, 0, 1, 1], [], []>} : vector<32x8xf32>, vector<8x256xf32>, vector<32x256xf32> -> vector<32x256xf32>
    %c0_3 = arith.constant 0 : index
    %c0_4 = arith.constant 0 : index
    %3 = vector.load %arg2[%c0_3, %c0_4] : memref<32x256xf32, #tpu.memory_space<vmem>>, vector<32x256xf32>
    %4 = arith.addf %2, %3 : vector<32x256xf32>
    %cst_5 = arith.constant 0.000000e+00 : f32
    %5 = vector.broadcast %cst_5 : f32 to vector<32x256xf32>
    %6 = arith.maximumf %4, %5 : vector<32x256xf32>
    %c0_6 = arith.constant 0 : index
    %c0_7 = arith.constant 0 : index
    %c0_8 = arith.constant 0 : index
    %7 = vector.load %arg4[%c0_6, %c0_7, %c0_8] : memref<4x32x32xf32, #tpu.memory_space<vmem>>, vector<1x32x32xf32>
    %8 = vector.shape_cast %7 : vector<1x32x32xf32> to vector<32x32xf32>
    %cst_9 = arith.constant dense<0.000000e+00> : vector<32x256xf32>
    %9 = tpu.matmul %8, %6, %cst_9 {dimension_numbers = #tpu.dot_dimension_numbers<[1], [0], [0], [1], [0, 0, 1, 1], [], []>} : vector<32x32xf32>, vector<32x256xf32>, vector<32x256xf32> -> vector<32x256xf32>
    %c0_10 = arith.constant 0 : index
    %c0_11 = arith.constant 0 : index
    %c0_12 = arith.constant 0 : index
    %10 = vector.load %arg5[%c0_10, %c0_11, %c0_12] : memref<4x32x1xf32, #tpu.memory_space<vmem>>, vector<1x32x1xf32>
    %11 = vector.shape_cast %10 : vector<1x32x1xf32> to vector<32x1xf32>
    %12 = vector.broadcast %11 : vector<32x1xf32> to vector<32x256xf32>
    %13 = arith.addf %9, %12 : vector<32x256xf32>
    %cst_13 = arith.constant 0.000000e+00 : f32
    %14 = vector.broadcast %cst_13 : f32 to vector<32x256xf32>
    %15 = arith.maximumf %13, %14 : vector<32x256xf32>
    %c1 = arith.constant 1 : index
    %c0_14 = arith.constant 0 : index
    %c0_15 = arith.constant 0 : index
    %16 = vector.load %arg4[%c1, %c0_14, %c0_15] : memref<4x32x32xf32, #tpu.memory_space<vmem>>, vector<1x32x32xf32>
    %17 = vector.shape_cast %16 : vector<1x32x32xf32> to vector<32x32xf32>
    %cst_16 = arith.constant dense<0.000000e+00> : vector<32x256xf32>
    %18 = tpu.matmul %17, %15, %cst_16 {dimension_numbers = #tpu.dot_dimension_numbers<[1], [0], [0], [1], [0, 0, 1, 1], [], []>} : vector<32x32xf32>, vector<32x256xf32>, vector<32x256xf32> -> vector<32x256xf32>
    %c1_17 = arith.constant 1 : index
    %c0_18 = arith.constant 0 : index
    %c0_19 = arith.constant 0 : index
    %19 = vector.load %arg5[%c1_17, %c0_18, %c0_19] : memref<4x32x1xf32, #tpu.memory_space<vmem>>, vector<1x32x1xf32>
    %20 = vector.shape_cast %19 : vector<1x32x1xf32> to vector<32x1xf32>
    %21 = vector.broadcast %20 : vector<32x1xf32> to vector<32x256xf32>
    %22 = arith.addf %18, %21 : vector<32x256xf32>
    %cst_20 = arith.constant 0.000000e+00 : f32
    %23 = vector.broadcast %cst_20 : f32 to vector<32x256xf32>
    %24 = arith.maximumf %22, %23 : vector<32x256xf32>
    %c2 = arith.constant 2 : index
    %c0_21 = arith.constant 0 : index
    %c0_22 = arith.constant 0 : index
    %25 = vector.load %arg4[%c2, %c0_21, %c0_22] : memref<4x32x32xf32, #tpu.memory_space<vmem>>, vector<1x32x32xf32>
    %26 = vector.shape_cast %25 : vector<1x32x32xf32> to vector<32x32xf32>
    %cst_23 = arith.constant dense<0.000000e+00> : vector<32x256xf32>
    %27 = tpu.matmul %26, %24, %cst_23 {dimension_numbers = #tpu.dot_dimension_numbers<[1], [0], [0], [1], [0, 0, 1, 1], [], []>} : vector<32x32xf32>, vector<32x256xf32>, vector<32x256xf32> -> vector<32x256xf32>
    %c2_24 = arith.constant 2 : index
    %c0_25 = arith.constant 0 : index
    %c0_26 = arith.constant 0 : index
    %28 = vector.load %arg5[%c2_24, %c0_25, %c0_26] : memref<4x32x1xf32, #tpu.memory_space<vmem>>, vector<1x32x1xf32>
    %29 = vector.shape_cast %28 : vector<1x32x1xf32> to vector<32x1xf32>
    %30 = vector.broadcast %29 : vector<32x1xf32> to vector<32x256xf32>
    %31 = arith.addf %27, %30 : vector<32x256xf32>
    %cst_27 = arith.constant 0.000000e+00 : f32
    %32 = vector.broadcast %cst_27 : f32 to vector<32x256xf32>
    %33 = arith.maximumf %31, %32 : vector<32x256xf32>
    %c3 = arith.constant 3 : index
    %c0_28 = arith.constant 0 : index
    %c0_29 = arith.constant 0 : index
    %34 = vector.load %arg4[%c3, %c0_28, %c0_29] : memref<4x32x32xf32, #tpu.memory_space<vmem>>, vector<1x32x32xf32>
    %35 = vector.shape_cast %34 : vector<1x32x32xf32> to vector<32x32xf32>
    %cst_30 = arith.constant dense<0.000000e+00> : vector<32x256xf32>
    %36 = tpu.matmul %35, %33, %cst_30 {dimension_numbers = #tpu.dot_dimension_numbers<[1], [0], [0], [1], [0, 0, 1, 1], [], []>} : vector<32x32xf32>, vector<32x256xf32>, vector<32x256xf32> -> vector<32x256xf32>
    %c3_31 = arith.constant 3 : index
    %c0_32 = arith.constant 0 : index
    %c0_33 = arith.constant 0 : index
    %37 = vector.load %arg5[%c3_31, %c0_32, %c0_33] : memref<4x32x1xf32, #tpu.memory_space<vmem>>, vector<1x32x1xf32>
    %38 = vector.shape_cast %37 : vector<1x32x1xf32> to vector<32x1xf32>
    %39 = vector.broadcast %38 : vector<32x1xf32> to vector<32x256xf32>
    %40 = arith.addf %36, %39 : vector<32x256xf32>
    %cst_34 = arith.constant 0.000000e+00 : f32
    %41 = vector.broadcast %cst_34 : f32 to vector<32x256xf32>
    %42 = arith.maximumf %40, %41 : vector<32x256xf32>
    %c0_35 = arith.constant 0 : index
    %c0_36 = arith.constant 0 : index
    %43 = vector.load %arg6[%c0_35, %c0_36] : memref<2x32xf32, #tpu.memory_space<vmem>>, vector<2x32xf32>
    %cst_37 = arith.constant dense<0.000000e+00> : vector<2x256xf32>
    %44 = tpu.matmul %43, %42, %cst_37 {dimension_numbers = #tpu.dot_dimension_numbers<[1], [0], [0], [1], [0, 0, 1, 1], [], []>} : vector<2x32xf32>, vector<32x256xf32>, vector<2x256xf32> -> vector<2x256xf32>
    %c0_38 = arith.constant 0 : index
    %c0_39 = arith.constant 0 : index
    %45 = vector.load %arg7[%c0_38, %c0_39] : memref<2x1xf32, #tpu.memory_space<vmem>>, vector<2x1xf32>
    %46 = vector.broadcast %45 : vector<2x1xf32> to vector<2x256xf32>
    %47 = arith.addf %44, %46 : vector<2x256xf32>
    %c0_40 = arith.constant 0 : index
    %c0_41 = arith.constant 0 : index
    %48 = vector.load %arg8[%c0_40, %c0_41] : memref<2x256xf32, #tpu.memory_space<vmem>>, vector<2x256xf32>
    tpu.vector_store %arg8[%c0_40, %c0_41], %47 {strides = array<i32>} : memref<2x256xf32, #tpu.memory_space<vmem>>, vector<2x256xf32>,
    return
  }
  func.func @transform_0(%arg0: i32) -> (i32, i32) {
    %c0_i32 = arith.constant 0 : i32
    %c0_i32_0 = arith.constant 0 : i32
    return %c0_i32, %arg0 : i32, i32
  }
  func.func @transform_1(%arg0: i32) -> (i32, i32) {
    %c0_i32 = arith.constant 0 : i32
    %c0_i32_0 = arith.constant 0 : i32
    %c0_i32_1 = arith.constant 0 : i32
    return %c0_i32, %c0_i32_0 : i32, i32
  }
  func.func @transform_2(%arg0: i32) -> (i32, i32) {
    %c0_i32 = arith.constant 0 : i32
    %c0_i32_0 = arith.constant 0 : i32
    %c0_i32_1 = arith.constant 0 : i32
    return %c0_i32, %c0_i32_0 : i32, i32
  }
  func.func @transform_3(%arg0: i32) -> (i32, i32, i32) {
    %c0_i32 = arith.constant 0 : i32
    %c0_i32_0 = arith.constant 0 : i32
    %c0_i32_1 = arith.constant 0 : i32
    %c0_i32_2 = arith.constant 0 : i32
    return %c0_i32, %c0_i32_0, %c0_i32_1 : i32, i32, i32
  }
  func.func @transform_4(%arg0: i32) -> (i32, i32, i32) {
    %c0_i32 = arith.constant 0 : i32
    %c0_i32_0 = arith.constant 0 : i32
    %c0_i32_1 = arith.constant 0 : i32
    %c0_i32_2 = arith.constant 0 : i32
    return %c0_i32, %c0_i32_0, %c0_i32_1 : i32, i32, i32
  }
  func.func @transform_5(%arg0: i32) -> (i32, i32) {
    %c0_i32 = arith.constant 0 : i32
    %c0_i32_0 = arith.constant 0 : i32
    %c0_i32_1 = arith.constant 0 : i32
    return %c0_i32, %c0_i32_0 : i32, i32
  }
  func.func @transform_6(%arg0: i32) -> (i32, i32) {
    %c0_i32 = arith.constant 0 : i32
    %c0_i32_0 = arith.constant 0 : i32
    %c0_i32_1 = arith.constant 0 : i32
    return %c0_i32, %c0_i32_0 : i32, i32
  }
  func.func @transform_7(%arg0: i32) -> (i32, i32) {
    %c0_i32 = arith.constant 0 : i32
    %c0_i32_0 = arith.constant 0 : i32
    return %c0_i32, %arg0 : i32, i32
  }
}

</mosaic_0001>

<llo_original>
// kernel: tpu_custom_call.1
$region0: #{tpu_custom_call.1}
  #allocation0 [shape = 'u32[]', space=smem, size = 0x4, offset = 0x4, fixed_abs, tag = 'smem constant byte address 0x4 - core index']
  #allocation1 [shape = 'u32[144,128]{1,0:T(1,128)}', space=vmem, size = 0x12000, scoped, tag = 'internal scratch']
  %s0 = inlined_call_operand.vmem [shape: f32[8,512], index: 0, kind: input, shape index: {}]
  %s1 = inlined_call_operand.hbm [shape: f32[32,256], index: 1, kind: input, shape index: {}]
  %s2 = inlined_call_operand.vmem [shape: f32[32,8], index: 2, kind: input, shape index: {}]
  %s3 = inlined_call_operand.vmem [shape: f32[4,32,32], index: 3, kind: input, shape index: {}]
  %s4 = inlined_call_operand.vmem [shape: f32[4,32,1], index: 4, kind: input, shape index: {}]
  %s5 = inlined_call_operand.vmem [shape: f32[2,32], index: 5, kind: input, shape index: {}]
  %s6 = inlined_call_operand.vmem [shape: f32[2,1], index: 6, kind: input, shape index: {}]
  %s7 = inlined_call_operand.hbm [shape: f32[2,512], index: 7, kind: output, shape index: {}]
  %s8 = sld [smem:[#allocation0]]
  $region65: #{tpu_custom_call.1} parent=0
    _
  %s10 = ssub.s32 1, %s8
  %s11 = scalar_select 0, %s10, %s8
  $region1: #{tpu_custom_call.1} parent=0
    #allocation2 [shape = 'u8[32768]{0}', space=vmem, size = 0x8000, scoped, tag = 'input window, operand 1, single buffered']
    #allocation3 [shape = 's32[2]{0}', space=sflag, size = 0x8, scoped, tag = 'scoped memory for tpu_custom_call.1']
    #allocation4 [shape = 's32[2]{0}', space=sflag, size = 0x8, scoped, tag = 'scoped memory for tpu_custom_call.1']
    #allocation5 [shape = 'u8[4096]{0}', space=vmem, size = 0x1000, scoped, tag = 'output window, operand 0']
    %12 = vsyncpa [#allocation3], 0
    %13 = vsyncpa [#allocation4], 0
    %s14 = scalar_lea.sflag [#allocation4], 1
    %15 = vsyncpa %s14, 0
    loop: start=0, step=1, limit=4
    $region2: #{tpu_custom_call.1} parent=1 // loop_pre_header
      _
    $region3: #{tpu_custom_call.1} parent=1 // loop_header
      %s17 = sphi 0, %s21
      %p18 = scmp.ge.s32.totalorder %s17, 4
      %s27 = sphi 0, %s29
      %s30 = sphi 0, %s27
      %s31 = sphi 0, %s30
      %s47 = sphi 0, %s31
      %s51 = sphi 0, %s51
      %s53 = sphi 0, %s51
      %s54 = sphi 0, %s53
      %s68 = sphi 0, %s54
      %s72 = sphi 0, %s72
      %s74 = sphi 0, %s72
      %s75 = sphi 0, %s74
      %s89 = sphi 0, %s75
      %s93 = sphi 0, %s93
      %s95 = sphi 0, %s93
      %s96 = sphi 0, %s95
      %s110 = sphi 0, %s96
      %s114 = sphi 0, %s114
      %s116 = sphi 0, %s114
      %s117 = sphi 0, %s116
      %s131 = sphi 0, %s117
      %s135 = sphi 0, %s135
      %s137 = sphi 0, %s135
      %s138 = sphi 0, %s137
      %s152 = sphi 0, %s138
      %s156 = sphi 0, %s156
      %s158 = sphi 0, %s156
      %s159 = sphi 0, %s158
      %s173 = sphi 0, %s159
      %s179 = sphi 0, %s181
      %s182 = sphi 0, %s179
      %s183 = sphi 0, %s182
      %s199 = sphi 0, %s183
    $region4: #{tpu_custom_call.1} parent=1 // loop_header_branch
      %20 = sbr.rel (%p18) target = $region8
    $region5: #{tpu_custom_call.1} parent=1 // loop_body
      %s22 = ssub.s32 %s17, 1
      %s23 = ssub.s32 %s17, 2
      %s24 = sadd.s32 %s17, 1
      %s25 = ssub.s32 %s17, %s24
      %p26 = scmp.eq.s32.totalorder %s25, 0
      %s28 = sadd.s32 %s27, 1
      %s29 = scalar_select %p26, %s27, %s28
      %p32 = pneg %p26
      %p33 = scmp.eq.s32.totalorder %s17, 1
      %p34 = por %p32, %p33
      %p35 = scmp.ne.s32.totalorder %s27, %s30
      %p36 = scmp.eq.s32.totalorder %s17, 0
      %p37 = por %p35, %p36
      %p38 = scmp.ne.s32.totalorder %s27, %s30
      %p39 = scmp.eq.s32.totalorder %s22, 1
      %p40 = por %p38, %p39
      %p41 = scmp.ne.s32.totalorder %s30, %s31
      %p42 = scmp.eq.s32.totalorder %s22, 0
      %p43 = por %p41, %p42
      %p44 = scmp.ne.s32.totalorder %s30, %s31
      %p45 = scmp.eq.s32.totalorder %s23, 1
      %p46 = por %p44, %p45
      %p48 = scmp.ne.s32.totalorder %s31, %s47
      %p49 = scmp.eq.s32.totalorder %s23, 0
      %p50 = por %p48, %p49
      %s52 = sadd.s32 %s51, 1
      %p55 = scmp.eq.s32.totalorder %s17, 1
      %p56 = scmp.ne.s32.totalorder %s51, %s53
      %p57 = scmp.eq.s32.totalorder %s17, 0
      %p58 = por %p56, %p57
      %p59 = scmp.ne.s32.totalorder %s51, %s53
      %p60 = scmp.eq.s32.totalorder %s22, 1
      %p61 = por %p59, %p60
      %p62 = scmp.ne.s32.totalorder %s53, %s54
      %p63 = scmp.eq.s32.totalorder %s22, 0
      %p64 = por %p62, %p63
      %p65 = scmp.ne.s32.totalorder %s53, %s54
      %p66 = scmp.eq.s32.totalorder %s23, 1
      %p67 = por %p65, %p66
      %p69 = scmp.ne.s32.totalorder %s54, %s68
      %p70 = scmp.eq.s32.totalorder %s23, 0
      %p71 = por %p69, %p70
      %s73 = sadd.s32 %s72, 1
      %p76 = scmp.eq.s32.totalorder %s17, 1
      %p77 = scmp.ne.s32.totalorder %s72, %s74
      %p78 = scmp.eq.s32.totalorder %s17, 0
      %p79 = por %p77, %p78
      %p80 = scmp.ne.s32.totalorder %s72, %s74
      %p81 = scmp.eq.s32.totalorder %s22, 1
      %p82 = por %p80, %p81
      %p83 = scmp.ne.s32.totalorder %s74, %s75
      %p84 = scmp.eq.s32.totalorder %s22, 0
      %p85 = por %p83, %p84
      %p86 = scmp.ne.s32.totalorder %s74, %s75
      %p87 = scmp.eq.s32.totalorder %s23, 1
      %p88 = por %p86, %p87
      %p90 = scmp.ne.s32.totalorder %s75, %s89
      %p91 = scmp.eq.s32.totalorder %s23, 0
      %p92 = por %p90, %p91
      %s94 = sadd.s32 %s93, 1
      %p97 = scmp.eq.s32.totalorder %s17, 1
      %p98 = scmp.ne.s32.totalorder %s93, %s95
      %p99 = scmp.eq.s32.totalorder %s17, 0
      %p100 = por %p98, %p99
      %p101 = scmp.ne.s32.totalorder %s93, %s95
      %p102 = scmp.eq.s32.totalorder %s22, 1
      %p103 = por %p101, %p102
      %p104 = scmp.ne.s32.totalorder %s95, %s96
      %p105 = scmp.eq.s32.totalorder %s22, 0
      %p106 = por %p104, %p105
      %p107 = scmp.ne.s32.totalorder %s95, %s96
      %p108 = scmp.eq.s32.totalorder %s23, 1
      %p109 = por %p107, %p108
      %p111 = scmp.ne.s32.totalorder %s96, %s110
      %p112 = scmp.eq.s32.totalorder %s23, 0
      %p113 = por %p111, %p112
      %s115 = sadd.s32 %s114, 1
      %p118 = scmp.eq.s32.totalorder %s17, 1
      %p119 = scmp.ne.s32.totalorder %s114, %s116
      %p120 = scmp.eq.s32.totalorder %s17, 0
      %p121 = por %p119, %p120
      %p122 = scmp.ne.s32.totalorder %s114, %s116
      %p123 = scmp.eq.s32.totalorder %s22, 1
      %p124 = por %p122, %p123
      %p125 = scmp.ne.s32.totalorder %s116, %s117
      %p126 = scmp.eq.s32.totalorder %s22, 0
      %p127 = por %p125, %p126
      %p128 = scmp.ne.s32.totalorder %s116, %s117
      %p129 = scmp.eq.s32.totalorder %s23, 1
      %p130 = por %p128, %p129
      %p132 = scmp.ne.s32.totalorder %s117, %s131
      %p133 = scmp.eq.s32.totalorder %s23, 0
      %p134 = por %p132, %p133
      %s136 = sadd.s32 %s135, 1
      %p139 = scmp.eq.s32.totalorder %s17, 1
      %p140 = scmp.ne.s32.totalorder %s135, %s137
      %p141 = scmp.eq.s32.totalorder %s17, 0
      %p142 = por %p140, %p141
      %p143 = scmp.ne.s32.totalorder %s135, %s137
      %p144 = scmp.eq.s32.totalorder %s22, 1
      %p145 = por %p143, %p144
      %p146 = scmp.ne.s32.totalorder %s137, %s138
      %p147 = scmp.eq.s32.totalorder %s22, 0
      %p148 = por %p146, %p147
      %p149 = scmp.ne.s32.totalorder %s137, %s138
      %p150 = scmp.eq.s32.totalorder %s23, 1
      %p151 = por %p149, %p150
      %p153 = scmp.ne.s32.totalorder %s138, %s152
      %p154 = scmp.eq.s32.totalorder %s23, 0
      %p155 = por %p153, %p154
      %s157 = sadd.s32 %s156, 1
      %p160 = scmp.eq.s32.totalorder %s17, 1
      %p161 = scmp.ne.s32.totalorder %s156, %s158
      %p162 = scmp.eq.s32.totalorder %s17, 0
      %p163 = por %p161, %p162
      %p164 = scmp.ne.s32.totalorder %s156, %s158
      %p165 = scmp.eq.s32.totalorder %s22, 1
      %p166 = por %p164, %p165
      %p167 = scmp.ne.s32.totalorder %s158, %s159
      %p168 = scmp.eq.s32.totalorder %s22, 0
      %p169 = por %p167, %p168
      %p170 = scmp.ne.s32.totalorder %s158, %s159
      %p171 = scmp.eq.s32.totalorder %s23, 1
      %p172 = por %p170, %p171
      %p174 = scmp.ne.s32.totalorder %s159, %s173
      %p175 = scmp.eq.s32.totalorder %s23, 0
      %p176 = por %p174, %p175
      %s177 = ssub.s32 %s17, %s24
      %p178 = scmp.eq.s32.totalorder %s177, 0
      %s180 = sadd.s32 %s179, 1
      %s181 = scalar_select %p178, %s179, %s180
      %p184 = pneg %p178
      %p185 = scmp.eq.s32.totalorder %s17, 1
      %p186 = por %p184, %p185
      %p187 = scmp.ne.s32.totalorder %s179, %s182
      %p188 = scmp.eq.s32.totalorder %s17, 0
      %p189 = por %p187, %p188
      %p190 = scmp.ne.s32.totalorder %s179, %s182
      %p191 = scmp.eq.s32.totalorder %s22, 1
      %p192 = por %p190, %p191
      %p193 = scmp.ne.s32.totalorder %s182, %s183
      %p194 = scmp.eq.s32.totalorder %s22, 0
      %p195 = por %p193, %p194
      %p196 = scmp.ne.s32.totalorder %s182, %s183
      %p197 = scmp.eq.s32.totalorder %s23, 1
      %p198 = por %p196, %p197
      %p200 = scmp.ne.s32.totalorder %s183, %s199
      %p201 = scmp.eq.s32.totalorder %s23, 0
      %p202 = por %p200, %p201
      %p203 = scmp.le.s32.totalorder 1, %s17
      %p204 = scmp.lt.s32.totalorder %s17, 3
      %p205 = pnand %p203, %p204
      %p206 = pneg %p205
      // Predicated region
      $region9: #{tpu_custom_call.1} parent=5 // pred_check
        _
      $region10: #{tpu_custom_call.1} parent=5 // pred_check_branch
        %208 = sbr.rel (%p205) target = $region12
      $region11: #{tpu_custom_call.1} parent=5 // pred_region
        %s209 = ssub.s32 %s17, 1
        // Predicated region
        $region13: #{tpu_custom_call.1} parent=11 // pred_check
          %p210 = pneg %p64
        $region14: #{tpu_custom_call.1} parent=11 // pred_check_branch
          %212 = sbr.rel (%p210) target = $region16
        $region15: #{tpu_custom_call.1} parent=11 // pred_region
          %s214 = ssub.s32 1024, 1024
          %215 = vsyncadd [#allocation3], %s214
          %s216 = sshll.u32 [#allocation2], 4
          %s217 = int_to_ptr.vmem [resolvable:$true] %s216
          %222 = dma.hbm_to_vmem [thread:$0]  %s1, 1024, %s217, [#allocation3], 256, 256, 16
        $region16: #{tpu_custom_call.1} parent=11 // pred_fallthru
          _
        // Predicated region
        $region17: #{tpu_custom_call.1} parent=11 // pred_check
          %p223 = pneg %p85
        $region18: #{tpu_custom_call.1} parent=11 // pred_check_branch
          %225 = sbr.rel (%p223) target = $region20
        $region19: #{tpu_custom_call.1} parent=11 // pred_region
          _
        $region20: #{tpu_custom_call.1} parent=11 // pred_fallthru
          _
        // Predicated region
        $region21: #{tpu_custom_call.1} parent=11 // pred_check
          %p226 = pneg %p106
        $region22: #{tpu_custom_call.1} parent=11 // pred_check_branch
          %228 = sbr.rel (%p226) target = $region24
        $region23: #{tpu_custom_call.1} parent=11 // pred_region
          _
        $region24: #{tpu_custom_call.1} parent=11 // pred_fallthru
          _
        // Predicated region
        $region25: #{tpu_custom_call.1} parent=11 // pred_check
          %p229 = pneg %p127
        $region26: #{tpu_custom_call.1} parent=11 // pred_check_branch
          %231 = sbr.rel (%p229) target = $region28
        $region27: #{tpu_custom_call.1} parent=11 // pred_region
          _
        $region28: #{tpu_custom_call.1} parent=11 // pred_fallthru
          _
        // Predicated region
        $region29: #{tpu_custom_call.1} parent=11 // pred_check
          %p232 = pneg %p148
        $region30: #{tpu_custom_call.1} parent=11 // pred_check_branch
          %234 = sbr.rel (%p232) target = $region32
        $region31: #{tpu_custom_call.1} parent=11 // pred_region
          _
        $region32: #{tpu_custom_call.1} parent=11 // pred_fallthru
          _
        // Predicated region
        $region33: #{tpu_custom_call.1} parent=11 // pred_check
          %p235 = pneg %p169
        $region34: #{tpu_custom_call.1} parent=11 // pred_check_branch
          %237 = sbr.rel (%p235) target = $region36
        $region35: #{tpu_custom_call.1} parent=11 // pred_region
          _
        $region36: #{tpu_custom_call.1} parent=11 // pred_fallthru
          _
      $region12: #{tpu_custom_call.1} parent=5 // pred_fallthru
        _
      %p238 = scmp.lt.s32.totalorder %s17, 2
      // Predicated region
      $region37: #{tpu_custom_call.1} parent=5 // pred_check
        %p239 = pneg %p238
      $region38: #{tpu_custom_call.1} parent=5 // pred_check_branch
        %241 = sbr.rel (%p239) target = $region40
      $region39: #{tpu_custom_call.1} parent=5 // pred_region
        // Predicated region
        $region41: #{tpu_custom_call.1} parent=39 // pred_check
          %p242 = pneg %p37
        $region42: #{tpu_custom_call.1} parent=39 // pred_check_branch
          %244 = sbr.rel (%p242) target = $region44
        $region43: #{tpu_custom_call.1} parent=39 // pred_region
          %s245 = smul.u32 2, %s17
          %p246 = scmp.lt.s32.totalorder %s245, 3
          %s247 = scalar_select %p246, %s245, 3
          %s248 = smul.addr %s247, 8
          %s249 = scalar_lea.vmem %s0, %s248
          %s250 = smul.u32 2, %s17
        $region44: #{tpu_custom_call.1} parent=39 // pred_fallthru
          _
      $region40: #{tpu_custom_call.1} parent=5 // pred_fallthru
        _
      %p251 = scmp.le.s32.totalorder 1, %s17
      %p252 = scmp.lt.s32.totalorder %s17, 3
      %p253 = pnand %p251, %p252
      %p254 = pneg %p253
      // Predicated region
      $region45: #{tpu_custom_call.1} parent=5 // pred_check
        _
      $region46: #{tpu_custom_call.1} parent=5 // pred_check_branch
        %256 = sbr.rel (%p253) target = $region48
      $region47: #{tpu_custom_call.1} parent=5 // pred_region
        %s257 = ssub.s32 %s17, 1
        // Predicated region
        $region49: #{tpu_custom_call.1} parent=47 // pred_check
          %p258 = pneg %p64
        $region50: #{tpu_custom_call.1} parent=47 // pred_check_branch
          %260 = sbr.rel (%p258) target = $region52
        $region51: #{tpu_custom_call.1} parent=47 // pred_region
          %261 = dma.done [#allocation3], 1024
        $region52: #{tpu_custom_call.1} parent=47 // pred_fallthru
          _
        %s262 = smul.u32 2, %s22
        %p263 = scmp.lt.s32.totalorder %s262, 3
        %s264 = scalar_select %p263, %s262, 3
        %s265 = smul.addr %s264, 8
        %s266 = scalar_lea.vmem %s0, %s265
        %p267 = pneg %p43
        %p268 = pneg %p40
        %p269 = pneg %p64
        %p270 = pneg %p61
        %p271 = pneg %p85
        %p272 = pneg %p82
        %p273 = pneg %p106
        %p274 = pneg %p103
        %p275 = pneg %p127
        %p276 = pneg %p124
        %p277 = pneg %p148
        %p278 = pneg %p145
        %p279 = pneg %p169
        %p280 = pneg %p166
        %p281 = pneg %p195
        %p282 = pneg %p192
        %s283 = sand.u32 %s182, 1
        %s284 = scalar_lea.sflag [#allocation4], %s283
        %s285 = sand.u32 %s182, 1
        %s286 = smul.addr %s285, 4
        %s287 = scalar_lea.vmem [#allocation5], %s286
        %s288 = smul.u32 2, %s22
        %p289 = scmp.lt.s32.totalorder %s288, 3
        %s290 = scalar_select %p289, %s288, 3
        %s291 = smul.addr %s290, 8
        %s292 = scalar_lea.vmem %s0, %s291
        %s293 = smul.u32 2, %s22
        %s294 = smul.u32 2, %s22
        %v295 = vld [vmem:[%s2] sm:$0xff]
        %v296 = vld [vmem:[%s2 + $0x8] sm:$0xff]
        %v297 = vld [vmem:[%s2 + $0x10] sm:$0xff]
        %v298 = vld [vmem:[%s2 + $0x18] sm:$0xff]
        %v299 = vld [vmem:[%s292] sm:$0xff]
        %v300 = vld [vmem:[%s292 + $0x8] sm:$0xff]
        %v301 = vld [vmem:[#allocation2] sm:$0xff]
        %v302 = vld [vmem:[#allocation2 + $0x8] sm:$0xff]
        %v303 = vld [vmem:[#allocation2 + $0x10] sm:$0xff]
        %v304 = vld [vmem:[#allocation2 + $0x18] sm:$0xff]
        %v305 = vld [vmem:[#allocation2 + $0x20] sm:$0xff]
        %v306 = vld [vmem:[#allocation2 + $0x28] sm:$0xff]
        %v307 = vld [vmem:[#allocation2 + $0x30] sm:$0xff]
        %v308 = vld [vmem:[#allocation2 + $0x38] sm:$0xff]
        %vm309 = vcmask 64512
        %v311 = vsel %vm309, %v295, 0
        %v314 = vsel %vm309, %v296, 0
        %v317 = vsel %vm309, %v297, 0
        %v320 = vsel %vm309, %v298, 0
        %322 = vmatprep.subr.mxu0 0.0
        %323 = vmatpush1.msra.mxu0 0.0
        %324 = vmatprep.subr.mxu0 0.0
        %325 = vmatpush1.msra.mxu0 0.0
        %326 = vmatprep.subr.mxu0 0.0
        %327 = vmatpush1.msra.mxu0 0.0
        %328 = vmatprep.subr.mxu0 0.0
        %329 = vmatpush1.msra.mxu0 0.0
        %330 = vmatprep.subr.mxu0 0.0
        %331 = vmatpush1.msra.mxu0 0.0
        %332 = vmatprep.subr.mxu0 0.0
        %333 = vmatpush1.msra.mxu0 0.0
        %334 = vmatprep.subr.mxu0 0.0
        %335 = vmatpush1.msra.mxu0 0.0
        %336 = vmatprep.subr.mxu0 0.0
        %337 = vmatpush1.msra.mxu0 0.0
        %338 = vmatprep.subr.mxu0 0.0
        %339 = vmatpush1.msra.mxu0 0.0
        %340 = vmatprep.subr.mxu0 0.0
        %341 = vmatpush1.msra.mxu0 0.0
        %342 = vmatprep.subr.mxu0 0.0
        %343 = vmatpush1.msra.mxu0 0.0
        %344 = vmatprep.subr.mxu0 0.0
        %345 = vmatpush1.msra.mxu0 0.0
        %346 = vmatprep.subr.mxu0 0.0
        %347 = vmatpush1.msra.mxu0 0.0
        %348 = vmatprep.subr.mxu0 0.0
        %349 = vmatpush1.msra.mxu0 0.0
        %350 = vmatprep.subr.mxu0 0.0
        %351 = vmatpush1.msra.mxu0 0.0
        %352 = vmatprep.subr.mxu0 %v300
        %353 = vmatpush1.msra.mxu0 %v299
        %354 = vmatprep.subr.mxu0 0.0
        %355 = vmatpush2.msra.mxu0 0.0
        %356 = vmatprep.subr.mxu0 0.0
        %357 = vmatpush2.msra.mxu0 0.0
        %358 = vmatprep.subr.mxu0 0.0
        %359 = vmatpush2.msra.mxu0 0.0
        %360 = vmatprep.subr.mxu0 0.0
        %361 = vmatpush2.msra.mxu0 0.0
        %362 = vmatprep.subr.mxu0 0.0
        %363 = vmatpush2.msra.mxu0 0.0
        %364 = vmatprep.subr.mxu0 0.0
        %365 = vmatpush2.msra.mxu0 0.0
        %366 = vmatprep.subr.mxu0 0.0
        %367 = vmatpush2.msra.mxu0 0.0
        %368 = vmatprep.subr.mxu0 0.0
        %369 = vmatpush2.msra.mxu0 0.0
        %370 = vmatprep.subr.mxu0 0.0
        %371 = vmatpush2.msra.mxu0 0.0
        %372 = vmatprep.subr.mxu0 0.0
        %373 = vmatpush2.msra.mxu0 0.0
        %374 = vmatprep.subr.mxu0 0.0
        %375 = vmatpush2.msra.mxu0 0.0
        %376 = vmatprep.subr.mxu0 0.0
        %377 = vmatpush2.msra.mxu0 0.0
        %378 = vmatprep.subr.mxu0 0.0
        %379 = vmatpush2.msra.mxu0 0.0
        %380 = vmatprep.subr.mxu0 0.0
        %381 = vmatpush2.msra.mxu0 0.0
        %382 = vmatprep.subr.mxu0 0.0
        %383 = vmatpush2.msra.mxu0 0.0
        %384 = vmatprep.subr.mxu0 0.0
        %385 = vmatpush2.msra.mxu0 0.0
        %386 = vmatprep.mubr.f32.mxu0 0.0
        %387 = vmatmul.mubr.f32.gmra.mxu0 %v311
        %v388 = vpop.f32.mrf.mxu0
        %v389 = vadd.f32 %v301, %v388
        %v390 = vpop.f32.mrf.mxu0
        %v391 = vadd.f32 %v302, %v390
        %392 = vmatprep.mubr.f32.mxu0 0.0
        %393 = vmatmul.mubr.f32.gmra.mxu0 %v314
        %v394 = vpop.f32.mrf.mxu0
        %v395 = vadd.f32 %v303, %v394
        %v396 = vpop.f32.mrf.mxu0
        %v397 = vadd.f32 %v304, %v396
        %398 = vmatprep.mubr.f32.mxu0 0.0
        %399 = vmatmul.mubr.f32.gmra.mxu0 %v317
        %v400 = vpop.f32.mrf.mxu0
        %v401 = vadd.f32 %v305, %v400
        %v402 = vpop.f32.mrf.mxu0
        %v403 = vadd.f32 %v306, %v402
        %404 = vmatprep.mubr.f32.mxu0 0.0
        %405 = vmatmul.mubr.f32.gmra.mxu0 %v320
        %v406 = vpop.f32.mrf.mxu0
        %v407 = vadd.f32 %v307, %v406
        %v408 = vpop.f32.mrf.mxu0
        %v409 = vadd.f32 %v308, %v408
        %410 = vdwg.mxu0
        %v411 = vmax.f32 %v389, 0.0
        %v412 = vmax.f32 %v391, 0.0
        %v413 = vmax.f32 %v395, 0.0
        %v414 = vmax.f32 %v397, 0.0
        %v415 = vmax.f32 %v401, 0.0
        %v416 = vmax.f32 %v403, 0.0
        %v417 = vmax.f32 %v407, 0.0
        %v418 = vmax.f32 %v409, 0.0
        %v419 = vld [vmem:[%s3] sm:$0xff]
        %v420 = vld [vmem:[%s3 + $0x8] sm:$0xff]
        %v421 = vld [vmem:[%s3 + $0x10] sm:$0xff]
        %v422 = vld [vmem:[%s3 + $0x18] sm:$0xff]
        %v423 = vld [vmem:[%s4] sm:$0xff]
        %v424 = vld [vmem:[%s4 + $0x8] sm:$0xff]
        %v425 = vld [vmem:[%s4 + $0x10] sm:$0xff]
        %v426 = vld [vmem:[%s4 + $0x18] sm:$0xff]
        %428 = vset.pattern.permute.xlu0 0
        %429 = vperm.xlu0 %428, %v423
        %v430 = vpop.permute.xlu0 %429
        %433 = vset.pattern.permute.xlu0 0
        %434 = vperm.xlu0 %433, %v424
        %v435 = vpop.permute.xlu0 %434
        %438 = vset.pattern.permute.xlu0 0
        %439 = vperm.xlu0 %438, %v425
        %v440 = vpop.permute.xlu0 %439
        %443 = vset.pattern.permute.xlu0 0
        %444 = vperm.xlu0 %443, %v426
        %v445 = vpop.permute.xlu0 %444
        %vm447 = vcmask 261120
        %v449 = vsel %vm447, %v419, 0
        %v452 = vsel %vm447, %v420, 0
        %v455 = vsel %vm447, %v421, 0
        %v458 = vsel %vm447, %v422, 0
        %460 = vmatprep.subr.mxu0 0.0
        %461 = vmatpush1.msra.mxu0 0.0
        %462 = vmatprep.subr.mxu0 0.0
        %463 = vmatpush1.msra.mxu0 0.0
        %464 = vmatprep.subr.mxu0 0.0
        %465 = vmatpush1.msra.mxu0 0.0
        %466 = vmatprep.subr.mxu0 0.0
        %467 = vmatpush1.msra.mxu0 0.0
        %468 = vmatprep.subr.mxu0 0.0
        %469 = vmatpush1.msra.mxu0 0.0
        %470 = vmatprep.subr.mxu0 0.0
        %471 = vmatpush1.msra.mxu0 0.0
        %472 = vmatprep.subr.mxu0 0.0
        %473 = vmatpush1.msra.mxu0 0.0
        %474 = vmatprep.subr.mxu0 0.0
        %475 = vmatpush1.msra.mxu0 0.0
        %476 = vmatprep.subr.mxu0 0.0
        %477 = vmatpush1.msra.mxu0 0.0
        %478 = vmatprep.subr.mxu0 0.0
        %479 = vmatpush1.msra.mxu0 0.0
        %480 = vmatprep.subr.mxu0 0.0
        %481 = vmatpush1.msra.mxu0 0.0
        %482 = vmatprep.subr.mxu0 0.0
        %483 = vmatpush1.msra.mxu0 0.0
        %484 = vmatprep.subr.mxu0 %v418
        %485 = vmatpush1.msra.mxu0 %v417
        %486 = vmatprep.subr.mxu0 %v416
        %487 = vmatpush1.msra.mxu0 %v415
        %488 = vmatprep.subr.mxu0 %v414
        %489 = vmatpush1.msra.mxu0 %v413
        %490 = vmatprep.subr.mxu0 %v412
        %491 = vmatpush1.msra.mxu0 %v411
        %492 = vmatprep.subr.mxu0 0.0
        %493 = vmatpush2.msra.mxu0 0.0
        %494 = vmatprep.subr.mxu0 0.0
        %495 = vmatpush2.msra.mxu0 0.0
        %496 = vmatprep.subr.mxu0 0.0
        %497 = vmatpush2.msra.mxu0 0.0
        %498 = vmatprep.subr.mxu0 0.0
        %499 = vmatpush2.msra.mxu0 0.0
        %500 = vmatprep.subr.mxu0 0.0
        %501 = vmatpush2.msra.mxu0 0.0
        %502 = vmatprep.subr.mxu0 0.0
        %503 = vmatpush2.msra.mxu0 0.0
        %504 = vmatprep.subr.mxu0 0.0
        %505 = vmatpush2.msra.mxu0 0.0
        %506 = vmatprep.subr.mxu0 0.0
        %507 = vmatpush2.msra.mxu0 0.0
        %508 = vmatprep.subr.mxu0 0.0
        %509 = vmatpush2.msra.mxu0 0.0
        %510 = vmatprep.subr.mxu0 0.0
        %511 = vmatpush2.msra.mxu0 0.0
        %512 = vmatprep.subr.mxu0 0.0
        %513 = vmatpush2.msra.mxu0 0.0
        %514 = vmatprep.subr.mxu0 0.0
        %515 = vmatpush2.msra.mxu0 0.0
        %516 = vmatprep.subr.mxu0 0.0
        %517 = vmatpush2.msra.mxu0 0.0
        %518 = vmatprep.subr.mxu0 0.0
        %519 = vmatpush2.msra.mxu0 0.0
        %520 = vmatprep.subr.mxu0 0.0
        %521 = vmatpush2.msra.mxu0 0.0
        %522 = vmatprep.subr.mxu0 0.0
        %523 = vmatpush2.msra.mxu0 0.0
        %524 = vmatprep.mubr.f32.mxu0 0.0
        %525 = vmatmul.mubr.f32.gmra.mxu0 %v449
        %v526 = vpop.f32.mrf.mxu0
        %v527 = vadd.f32 %v430, %v526
        %v528 = vpop.f32.mrf.mxu0
        %v529 = vadd.f32 %v430, %v528
        %530 = vmatprep.mubr.f32.mxu0 0.0
        %531 = vmatmul.mubr.f32.gmra.mxu0 %v452
        %v532 = vpop.f32.mrf.mxu0
        %v533 = vadd.f32 %v435, %v532
        %v534 = vpop.f32.mrf.mxu0
        %v535 = vadd.f32 %v435, %v534
        %536 = vmatprep.mubr.f32.mxu0 0.0
        %537 = vmatmul.mubr.f32.gmra.mxu0 %v455
        %v538 = vpop.f32.mrf.mxu0
        %v539 = vadd.f32 %v440, %v538
        %v540 = vpop.f32.mrf.mxu0
        %v541 = vadd.f32 %v440, %v540
        %542 = vmatprep.mubr.f32.mxu0 0.0
        %543 = vmatmul.mubr.f32.gmra.mxu0 %v458
        %v544 = vpop.f32.mrf.mxu0
        %v545 = vadd.f32 %v445, %v544
        %v546 = vpop.f32.mrf.mxu0
        %v547 = vadd.f32 %v445, %v546
        %548 = vdwg.mxu0
        %v549 = vmax.f32 %v527, 0.0
        %v550 = vmax.f32 %v529, 0.0
        %v551 = vmax.f32 %v533, 0.0
        %v552 = vmax.f32 %v535, 0.0
        %v553 = vmax.f32 %v539, 0.0
        %v554 = vmax.f32 %v541, 0.0
        %v555 = vmax.f32 %v545, 0.0
        %v556 = vmax.f32 %v547, 0.0
        %s557 = scalar_lea.vmem %s3, 32
        %v558 = vld [vmem:[%s557] sm:$0xff]
        %v559 = vld [vmem:[%s557 + $0x8] sm:$0xff]
        %v560 = vld [vmem:[%s557 + $0x10] sm:$0xff]
        %v561 = vld [vmem:[%s557 + $0x18] sm:$0xff]
        %s562 = scalar_lea.vmem %s4, 32
        %v563 = vld [vmem:[%s562] sm:$0xff]
        %v564 = vld [vmem:[%s562 + $0x8] sm:$0xff]
        %v565 = vld [vmem:[%s562 + $0x10] sm:$0xff]
        %v566 = vld [vmem:[%s562 + $0x18] sm:$0xff]
        %568 = vset.pattern.permute.xlu0 0
        %569 = vperm.xlu0 %568, %v563
        %v570 = vpop.permute.xlu0 %569
        %573 = vset.pattern.permute.xlu0 0
        %574 = vperm.xlu0 %573, %v564
        %v575 = vpop.permute.xlu0 %574
        %578 = vset.pattern.permute.xlu0 0
        %579 = vperm.xlu0 %578, %v565
        %v580 = vpop.permute.xlu0 %579
        %583 = vset.pattern.permute.xlu0 0
        %584 = vperm.xlu0 %583, %v566
        %v585 = vpop.permute.xlu0 %584
        %v588 = vsel %vm447, %v558, 0
        %v591 = vsel %vm447, %v559, 0
        %v594 = vsel %vm447, %v560, 0
        %v597 = vsel %vm447, %v561, 0
        %599 = vmatprep.subr.mxu0 0.0
        %600 = vmatpush1.msra.mxu0 0.0
        %601 = vmatprep.subr.mxu0 0.0
        %602 = vmatpush1.msra.mxu0 0.0
        %603 = vmatprep.subr.mxu0 0.0
        %604 = vmatpush1.msra.mxu0 0.0
        %605 = vmatprep.subr.mxu0 0.0
        %606 = vmatpush1.msra.mxu0 0.0
        %607 = vmatprep.subr.mxu0 0.0
        %608 = vmatpush1.msra.mxu0 0.0
        %609 = vmatprep.subr.mxu0 0.0
        %610 = vmatpush1.msra.mxu0 0.0
        %611 = vmatprep.subr.mxu0 0.0
        %612 = vmatpush1.msra.mxu0 0.0
        %613 = vmatprep.subr.mxu0 0.0
        %614 = vmatpush1.msra.mxu0 0.0
        %615 = vmatprep.subr.mxu0 0.0
        %616 = vmatpush1.msra.mxu0 0.0
        %617 = vmatprep.subr.mxu0 0.0
        %618 = vmatpush1.msra.mxu0 0.0
        %619 = vmatprep.subr.mxu0 0.0
        %620 = vmatpush1.msra.mxu0 0.0
        %621 = vmatprep.subr.mxu0 0.0
        %622 = vmatpush1.msra.mxu0 0.0
        %623 = vmatprep.subr.mxu0 %v556
        %624 = vmatpush1.msra.mxu0 %v555
        %625 = vmatprep.subr.mxu0 %v554
        %626 = vmatpush1.msra.mxu0 %v553
        %627 = vmatprep.subr.mxu0 %v552
        %628 = vmatpush1.msra.mxu0 %v551
        %629 = vmatprep.subr.mxu0 %v550
        %630 = vmatpush1.msra.mxu0 %v549
        %631 = vmatprep.subr.mxu0 0.0
        %632 = vmatpush2.msra.mxu0 0.0
        %633 = vmatprep.subr.mxu0 0.0
        %634 = vmatpush2.msra.mxu0 0.0
        %635 = vmatprep.subr.mxu0 0.0
        %636 = vmatpush2.msra.mxu0 0.0
        %637 = vmatprep.subr.mxu0 0.0
        %638 = vmatpush2.msra.mxu0 0.0
        %639 = vmatprep.subr.mxu0 0.0
        %640 = vmatpush2.msra.mxu0 0.0
        %641 = vmatprep.subr.mxu0 0.0
        %642 = vmatpush2.msra.mxu0 0.0
        %643 = vmatprep.subr.mxu0 0.0
        %644 = vmatpush2.msra.mxu0 0.0
        %645 = vmatprep.subr.mxu0 0.0
        %646 = vmatpush2.msra.mxu0 0.0
        %647 = vmatprep.subr.mxu0 0.0
        %648 = vmatpush2.msra.mxu0 0.0
        %649 = vmatprep.subr.mxu0 0.0
        %650 = vmatpush2.msra.mxu0 0.0
        %651 = vmatprep.subr.mxu0 0.0
        %652 = vmatpush2.msra.mxu0 0.0
        %653 = vmatprep.subr.mxu0 0.0
        %654 = vmatpush2.msra.mxu0 0.0
        %655 = vmatprep.subr.mxu0 0.0
        %656 = vmatpush2.msra.mxu0 0.0
        %657 = vmatprep.subr.mxu0 0.0
        %658 = vmatpush2.msra.mxu0 0.0
        %659 = vmatprep.subr.mxu0 0.0
        %660 = vmatpush2.msra.mxu0 0.0
        %661 = vmatprep.subr.mxu0 0.0
        %662 = vmatpush2.msra.mxu0 0.0
        %663 = vmatprep.mubr.f32.mxu0 0.0
        %664 = vmatmul.mubr.f32.gmra.mxu0 %v588
        %v665 = vpop.f32.mrf.mxu0
        %v666 = vadd.f32 %v570, %v665
        %v667 = vpop.f32.mrf.mxu0
        %v668 = vadd.f32 %v570, %v667
        %669 = vmatprep.mubr.f32.mxu0 0.0
        %670 = vmatmul.mubr.f32.gmra.mxu0 %v591
        %v671 = vpop.f32.mrf.mxu0
        %v672 = vadd.f32 %v575, %v671
        %v673 = vpop.f32.mrf.mxu0
        %v674 = vadd.f32 %v575, %v673
        %675 = vmatprep.mubr.f32.mxu0 0.0
        %676 = vmatmul.mubr.f32.gmra.mxu0 %v594
        %v677 = vpop.f32.mrf.mxu0
        %v678 = vadd.f32 %v580, %v677
        %v679 = vpop.f32.mrf.mxu0
        %v680 = vadd.f32 %v580, %v679
        %681 = vmatprep.mubr.f32.mxu0 0.0
        %682 = vmatmul.mubr.f32.gmra.mxu0 %v597
        %v683 = vpop.f32.mrf.mxu0
        %v684 = vadd.f32 %v585, %v683
        %v685 = vpop.f32.mrf.mxu0
        %v686 = vadd.f32 %v585, %v685
        %687 = vdwg.mxu0
        %v688 = vmax.f32 %v666, 0.0
        %v689 = vmax.f32 %v668, 0.0
        %v690 = vmax.f32 %v672, 0.0
        %v691 = vmax.f32 %v674, 0.0
        %v692 = vmax.f32 %v678, 0.0
        %v693 = vmax.f32 %v680, 0.0
        %v694 = vmax.f32 %v684, 0.0
        %v695 = vmax.f32 %v686, 0.0
        %s696 = scalar_lea.vmem %s3, 64
        %v697 = vld [vmem:[%s696] sm:$0xff]
        %v698 = vld [vmem:[%s696 + $0x8] sm:$0xff]
        %v699 = vld [vmem:[%s696 + $0x10] sm:$0xff]
        %v700 = vld [vmem:[%s696 + $0x18] sm:$0xff]
        %s701 = scalar_lea.vmem %s4, 64
        %v702 = vld [vmem:[%s701] sm:$0xff]
        %v703 = vld [vmem:[%s701 + $0x8] sm:$0xff]
        %v704 = vld [vmem:[%s701 + $0x10] sm:$0xff]
        %v705 = vld [vmem:[%s701 + $0x18] sm:$0xff]
        %707 = vset.pattern.permute.xlu0 0
        %708 = vperm.xlu0 %707, %v702
        %v709 = vpop.permute.xlu0 %708
        %712 = vset.pattern.permute.xlu0 0
        %713 = vperm.xlu0 %712, %v703
        %v714 = vpop.permute.xlu0 %713
        %717 = vset.pattern.permute.xlu0 0
        %718 = vperm.xlu0 %717, %v704
        %v719 = vpop.permute.xlu0 %718
        %722 = vset.pattern.permute.xlu0 0
        %723 = vperm.xlu0 %722, %v705
        %v724 = vpop.permute.xlu0 %723
        %v727 = vsel %vm447, %v697, 0
        %v730 = vsel %vm447, %v698, 0
        %v733 = vsel %vm447, %v699, 0
        %v736 = vsel %vm447, %v700, 0
        %738 = vmatprep.subr.mxu0 0.0
        %739 = vmatpush1.msra.mxu0 0.0
        %740 = vmatprep.subr.mxu0 0.0
        %741 = vmatpush1.msra.mxu0 0.0
        %742 = vmatprep.subr.mxu0 0.0
        %743 = vmatpush1.msra.mxu0 0.0
        %744 = vmatprep.subr.mxu0 0.0
        %745 = vmatpush1.msra.mxu0 0.0
        %746 = vmatprep.subr.mxu0 0.0
        %747 = vmatpush1.msra.mxu0 0.0
        %748 = vmatprep.subr.mxu0 0.0
        %749 = vmatpush1.msra.mxu0 0.0
        %750 = vmatprep.subr.mxu0 0.0
        %751 = vmatpush1.msra.mxu0 0.0
        %752 = vmatprep.subr.mxu0 0.0
        %753 = vmatpush1.msra.mxu0 0.0
        %754 = vmatprep.subr.mxu0 0.0
        %755 = vmatpush1.msra.mxu0 0.0
        %756 = vmatprep.subr.mxu0 0.0
        %757 = vmatpush1.msra.mxu0 0.0
        %758 = vmatprep.subr.mxu0 0.0
        %759 = vmatpush1.msra.mxu0 0.0
        %760 = vmatprep.subr.mxu0 0.0
        %761 = vmatpush1.msra.mxu0 0.0
        %762 = vmatprep.subr.mxu0 %v695
        %763 = vmatpush1.msra.mxu0 %v694
        %764 = vmatprep.subr.mxu0 %v693
        %765 = vmatpush1.msra.mxu0 %v692
        %766 = vmatprep.subr.mxu0 %v691
        %767 = vmatpush1.msra.mxu0 %v690
        %768 = vmatprep.subr.mxu0 %v689
        %769 = vmatpush1.msra.mxu0 %v688
        %770 = vmatprep.subr.mxu0 0.0
        %771 = vmatpush2.msra.mxu0 0.0
        %772 = vmatprep.subr.mxu0 0.0
        %773 = vmatpush2.msra.mxu0 0.0
        %774 = vmatprep.subr.mxu0 0.0
        %775 = vmatpush2.msra.mxu0 0.0
        %776 = vmatprep.subr.mxu0 0.0
        %777 = vmatpush2.msra.mxu0 0.0
        %778 = vmatprep.subr.mxu0 0.0
        %779 = vmatpush2.msra.mxu0 0.0
        %780 = vmatprep.subr.mxu0 0.0
        %781 = vmatpush2.msra.mxu0 0.0
        %782 = vmatprep.subr.mxu0 0.0
        %783 = vmatpush2.msra.mxu0 0.0
        %784 = vmatprep.subr.mxu0 0.0
        %785 = vmatpush2.msra.mxu0 0.0
        %786 = vmatprep.subr.mxu0 0.0
        %787 = vmatpush2.msra.mxu0 0.0
        %788 = vmatprep.subr.mxu0 0.0
        %789 = vmatpush2.msra.mxu0 0.0
        %790 = vmatprep.subr.mxu0 0.0
        %791 = vmatpush2.msra.mxu0 0.0
        %792 = vmatprep.subr.mxu0 0.0
        %793 = vmatpush2.msra.mxu0 0.0
        %794 = vmatprep.subr.mxu0 0.0
        %795 = vmatpush2.msra.mxu0 0.0
        %796 = vmatprep.subr.mxu0 0.0
        %797 = vmatpush2.msra.mxu0 0.0
        %798 = vmatprep.subr.mxu0 0.0
        %799 = vmatpush2.msra.mxu0 0.0
        %800 = vmatprep.subr.mxu0 0.0
        %801 = vmatpush2.msra.mxu0 0.0
        %802 = vmatprep.mubr.f32.mxu0 0.0
        %803 = vmatmul.mubr.f32.gmra.mxu0 %v727
        %v804 = vpop.f32.mrf.mxu0
        %v805 = vadd.f32 %v709, %v804
        %v806 = vpop.f32.mrf.mxu0
        %v807 = vadd.f32 %v709, %v806
        %808 = vmatprep.mubr.f32.mxu0 0.0
        %809 = vmatmul.mubr.f32.gmra.mxu0 %v730
        %v810 = vpop.f32.mrf.mxu0
        %v811 = vadd.f32 %v714, %v810
        %v812 = vpop.f32.mrf.mxu0
        %v813 = vadd.f32 %v714, %v812
        %814 = vmatprep.mubr.f32.mxu0 0.0
        %815 = vmatmul.mubr.f32.gmra.mxu0 %v733
        %v816 = vpop.f32.mrf.mxu0
        %v817 = vadd.f32 %v719, %v816
        %v818 = vpop.f32.mrf.mxu0
        %v819 = vadd.f32 %v719, %v818
        %820 = vmatprep.mubr.f32.mxu0 0.0
        %821 = vmatmul.mubr.f32.gmra.mxu0 %v736
        %v822 = vpop.f32.mrf.mxu0
        %v823 = vadd.f32 %v724, %v822
        %v824 = vpop.f32.mrf.mxu0
        %v825 = vadd.f32 %v724, %v824
        %826 = vdwg.mxu0
        %v827 = vmax.f32 %v805, 0.0
        %v828 = vmax.f32 %v807, 0.0
        %v829 = vmax.f32 %v811, 0.0
        %v830 = vmax.f32 %v813, 0.0
        %v831 = vmax.f32 %v817, 0.0
        %v832 = vmax.f32 %v819, 0.0
        %v833 = vmax.f32 %v823, 0.0
        %v834 = vmax.f32 %v825, 0.0
        %s835 = scalar_lea.vmem %s3, 96
        %v836 = vld [vmem:[%s835] sm:$0xff]
        %v837 = vld [vmem:[%s835 + $0x8] sm:$0xff]
        %v838 = vld [vmem:[%s835 + $0x10] sm:$0xff]
        %v839 = vld [vmem:[%s835 + $0x18] sm:$0xff]
        %s840 = scalar_lea.vmem %s4, 96
        %v841 = vld [vmem:[%s840] sm:$0xff]
        %v842 = vld [vmem:[%s840 + $0x8] sm:$0xff]
        %v843 = vld [vmem:[%s840 + $0x10] sm:$0xff]
        %v844 = vld [vmem:[%s840 + $0x18] sm:$0xff]
        %846 = vset.pattern.permute.xlu0 0
        %847 = vperm.xlu0 %846, %v841
        %v848 = vpop.permute.xlu0 %847
        %851 = vset.pattern.permute.xlu0 0
        %852 = vperm.xlu0 %851, %v842
        %v853 = vpop.permute.xlu0 %852
        %856 = vset.pattern.permute.xlu0 0
        %857 = vperm.xlu0 %856, %v843
        %v858 = vpop.permute.xlu0 %857
        %861 = vset.pattern.permute.xlu0 0
        %862 = vperm.xlu0 %861, %v844
        %v863 = vpop.permute.xlu0 %862
        %v866 = vsel %vm447, %v836, 0
        %v869 = vsel %vm447, %v837, 0
        %v872 = vsel %vm447, %v838, 0
        %v875 = vsel %vm447, %v839, 0
        %877 = vmatprep.subr.mxu0 0.0
        %878 = vmatpush1.msra.mxu0 0.0
        %879 = vmatprep.subr.mxu0 0.0
        %880 = vmatpush1.msra.mxu0 0.0
        %881 = vmatprep.subr.mxu0 0.0
        %882 = vmatpush1.msra.mxu0 0.0
        %883 = vmatprep.subr.mxu0 0.0
        %884 = vmatpush1.msra.mxu0 0.0
        %885 = vmatprep.subr.mxu0 0.0
        %886 = vmatpush1.msra.mxu0 0.0
        %887 = vmatprep.subr.mxu0 0.0
        %888 = vmatpush1.msra.mxu0 0.0
        %889 = vmatprep.subr.mxu0 0.0
        %890 = vmatpush1.msra.mxu0 0.0
        %891 = vmatprep.subr.mxu0 0.0
        %892 = vmatpush1.msra.mxu0 0.0
        %893 = vmatprep.subr.mxu0 0.0
        %894 = vmatpush1.msra.mxu0 0.0
        %895 = vmatprep.subr.mxu0 0.0
        %896 = vmatpush1.msra.mxu0 0.0
        %897 = vmatprep.subr.mxu0 0.0
        %898 = vmatpush1.msra.mxu0 0.0
        %899 = vmatprep.subr.mxu0 0.0
        %900 = vmatpush1.msra.mxu0 0.0
        %901 = vmatprep.subr.mxu0 %v834
        %902 = vmatpush1.msra.mxu0 %v833
        %903 = vmatprep.subr.mxu0 %v832
        %904 = vmatpush1.msra.mxu0 %v831
        %905 = vmatprep.subr.mxu0 %v830
        %906 = vmatpush1.msra.mxu0 %v829
        %907 = vmatprep.subr.mxu0 %v828
        %908 = vmatpush1.msra.mxu0 %v827
        %909 = vmatprep.subr.mxu0 0.0
        %910 = vmatpush2.msra.mxu0 0.0
        %911 = vmatprep.subr.mxu0 0.0
        %912 = vmatpush2.msra.mxu0 0.0
        %913 = vmatprep.subr.mxu0 0.0
        %914 = vmatpush2.msra.mxu0 0.0
        %915 = vmatprep.subr.mxu0 0.0
        %916 = vmatpush2.msra.mxu0 0.0
        %917 = vmatprep.subr.mxu0 0.0
        %918 = vmatpush2.msra.mxu0 0.0
        %919 = vmatprep.subr.mxu0 0.0
        %920 = vmatpush2.msra.mxu0 0.0
        %921 = vmatprep.subr.mxu0 0.0
        %922 = vmatpush2.msra.mxu0 0.0
        %923 = vmatprep.subr.mxu0 0.0
        %924 = vmatpush2.msra.mxu0 0.0
        %925 = vmatprep.subr.mxu0 0.0
        %926 = vmatpush2.msra.mxu0 0.0
        %927 = vmatprep.subr.mxu0 0.0
        %928 = vmatpush2.msra.mxu0 0.0
        %929 = vmatprep.subr.mxu0 0.0
        %930 = vmatpush2.msra.mxu0 0.0
        %931 = vmatprep.subr.mxu0 0.0
        %932 = vmatpush2.msra.mxu0 0.0
        %933 = vmatprep.subr.mxu0 0.0
        %934 = vmatpush2.msra.mxu0 0.0
        %935 = vmatprep.subr.mxu0 0.0
        %936 = vmatpush2.msra.mxu0 0.0
        %937 = vmatprep.subr.mxu0 0.0
        %938 = vmatpush2.msra.mxu0 0.0
        %939 = vmatprep.subr.mxu0 0.0
        %940 = vmatpush2.msra.mxu0 0.0
        %941 = vmatprep.mubr.f32.mxu0 0.0
        %942 = vmatmul.mubr.f32.gmra.mxu0 %v866
        %v943 = vpop.f32.mrf.mxu0
        %v944 = vadd.f32 %v848, %v943
        %v945 = vpop.f32.mrf.mxu0
        %v946 = vadd.f32 %v848, %v945
        %947 = vmatprep.mubr.f32.mxu0 0.0
        %948 = vmatmul.mubr.f32.gmra.mxu0 %v869
        %v949 = vpop.f32.mrf.mxu0
        %v950 = vadd.f32 %v853, %v949
        %v951 = vpop.f32.mrf.mxu0
        %v952 = vadd.f32 %v853, %v951
        %953 = vmatprep.mubr.f32.mxu0 0.0
        %954 = vmatmul.mubr.f32.gmra.mxu0 %v872
        %v955 = vpop.f32.mrf.mxu0
        %v956 = vadd.f32 %v858, %v955
        %v957 = vpop.f32.mrf.mxu0
        %v958 = vadd.f32 %v858, %v957
        %959 = vmatprep.mubr.f32.mxu0 0.0
        %960 = vmatmul.mubr.f32.gmra.mxu0 %v875
        %v961 = vpop.f32.mrf.mxu0
        %v962 = vadd.f32 %v863, %v961
        %v963 = vpop.f32.mrf.mxu0
        %v964 = vadd.f32 %v863, %v963
        %965 = vdwg.mxu0
        %v966 = vmax.f32 %v944, 0.0
        %v967 = vmax.f32 %v946, 0.0
        %v968 = vmax.f32 %v950, 0.0
        %v969 = vmax.f32 %v952, 0.0
        %v970 = vmax.f32 %v956, 0.0
        %v971 = vmax.f32 %v958, 0.0
        %v972 = vmax.f32 %v962, 0.0
        %v973 = vmax.f32 %v964, 0.0
        %v974 = vld [vmem:[%s5] sm:$0x3]
        %v975 = vld [vmem:[%s6] sm:$0x3]
        %977 = vset.pattern.permute.xlu0 0
        %978 = vperm.xlu0 %977, %v975
        %v979 = vpop.permute.xlu0 %978
        %v982 = vsel %vm447, %v974, 0
        %984 = vmatprep.subr.mxu0 0.0
        %985 = vmatpush1.msra.mxu0 0.0
        %986 = vmatprep.subr.mxu0 0.0
        %987 = vmatpush1.msra.mxu0 0.0
        %988 = vmatprep.subr.mxu0 0.0
        %989 = vmatpush1.msra.mxu0 0.0
        %990 = vmatprep.subr.mxu0 0.0
        %991 = vmatpush1.msra.mxu0 0.0
        %992 = vmatprep.subr.mxu0 0.0
        %993 = vmatpush1.msra.mxu0 0.0
        %994 = vmatprep.subr.mxu0 0.0
        %995 = vmatpush1.msra.mxu0 0.0
        %996 = vmatprep.subr.mxu0 0.0
        %997 = vmatpush1.msra.mxu0 0.0
        %998 = vmatprep.subr.mxu0 0.0
        %999 = vmatpush1.msra.mxu0 0.0
        %1000 = vmatprep.subr.mxu0 0.0
        %1001 = vmatpush1.msra.mxu0 0.0
        %1002 = vmatprep.subr.mxu0 0.0
        %1003 = vmatpush1.msra.mxu0 0.0
        %1004 = vmatprep.subr.mxu0 0.0
        %1005 = vmatpush1.msra.mxu0 0.0
        %1006 = vmatprep.subr.mxu0 0.0
        %1007 = vmatpush1.msra.mxu0 0.0
        %1008 = vmatprep.subr.mxu0 %v973
        %1009 = vmatpush1.msra.mxu0 %v972
        %1010 = vmatprep.subr.mxu0 %v971
        %1011 = vmatpush1.msra.mxu0 %v970
        %1012 = vmatprep.subr.mxu0 %v969
        %1013 = vmatpush1.msra.mxu0 %v968
        %1014 = vmatprep.subr.mxu0 %v967
        %1015 = vmatpush1.msra.mxu0 %v966
        %1016 = vmatprep.subr.mxu0 0.0
        %1017 = vmatpush2.msra.mxu0 0.0
        %1018 = vmatprep.subr.mxu0 0.0
        %1019 = vmatpush2.msra.mxu0 0.0
        %1020 = vmatprep.subr.mxu0 0.0
        %1021 = vmatpush2.msra.mxu0 0.0
        %1022 = vmatprep.subr.mxu0 0.0
        %1023 = vmatpush2.msra.mxu0 0.0
        %1024 = vmatprep.subr.mxu0 0.0
        %1025 = vmatpush2.msra.mxu0 0.0
        %1026 = vmatprep.subr.mxu0 0.0
        %1027 = vmatpush2.msra.mxu0 0.0
        %1028 = vmatprep.subr.mxu0 0.0
        %1029 = vmatpush2.msra.mxu0 0.0
        %1030 = vmatprep.subr.mxu0 0.0
        %1031 = vmatpush2.msra.mxu0 0.0
        %1032 = vmatprep.subr.mxu0 0.0
        %1033 = vmatpush2.msra.mxu0 0.0
        %1034 = vmatprep.subr.mxu0 0.0
        %1035 = vmatpush2.msra.mxu0 0.0
        %1036 = vmatprep.subr.mxu0 0.0
        %1037 = vmatpush2.msra.mxu0 0.0
        %1038 = vmatprep.subr.mxu0 0.0
        %1039 = vmatpush2.msra.mxu0 0.0
        %1040 = vmatprep.subr.mxu0 0.0
        %1041 = vmatpush2.msra.mxu0 0.0
        %1042 = vmatprep.subr.mxu0 0.0
        %1043 = vmatpush2.msra.mxu0 0.0
        %1044 = vmatprep.subr.mxu0 0.0
        %1045 = vmatpush2.msra.mxu0 0.0
        %1046 = vmatprep.subr.mxu0 0.0
        %1047 = vmatpush2.msra.mxu0 0.0
        %1048 = vmatprep.mubr.f32.mxu0 0.0
        %1049 = vmatmul.mubr.f32.gmra.mxu0 %v982
        %v1050 = vpop.f32.mrf.mxu0
        %v1051 = vadd.f32 %v979, %v1050
        %v1052 = vpop.f32.mrf.mxu0
        %v1053 = vadd.f32 %v979, %v1052
        %1054 = vdwg.mxu0
        %v1057 = vcombine.low %v1051, %v1053
        %v1059 = vunpack.c.l.s4 1983009808
        %v1060 = vunpack.c.0.s8 %v1059
        %v1061 = vlaneseq
        %v1062 = vshrl.u32 %v1061, 7
        %v1063 = vsub.s32 %v1060, %v1062
        %v1064 = vrot.slane %v1057, %v1063
        %1066 = vst [vmem:[%s287] sm:$0xf] %v1064
        %s1067 = sand.u32 %s182, 1
        %s1068 = scalar_lea.sflag [#allocation4], %s1067
        %s1069 = sand.u32 %s182, 1
        %s1070 = smul.addr %s1069, 4
        %s1071 = scalar_lea.vmem [#allocation5], %s1070
        // Predicated region
        $region53: #{tpu_custom_call.1} parent=47 // pred_check
          %p1072 = pneg %p192
        $region54: #{tpu_custom_call.1} parent=47 // pred_check_branch
          %1074 = sbr.rel (%p1072) target = $region56
        $region55: #{tpu_custom_call.1} parent=47 // pred_region
          %s1075 = smul.u32 2, %s22
          %s1077 = ssub.s32 64, 64
          %1078 = vsyncadd %s1068, %s1077
          %s1079 = smul.addr %s1075, 32
          %s1080 = scalar_lea.hbm %s7, %s1079
          %s1082 = sshll.u32 %s1071, 4
          %s1083 = int_to_ptr.vmem [resolvable:$true] %s1082
          %1085 = dma.vmem_to_hbm [thread:$0]  %s1083, 64, %s1080, %s1068
        $region56: #{tpu_custom_call.1} parent=47 // pred_fallthru
          _
      $region48: #{tpu_custom_call.1} parent=5 // pred_fallthru
        _
      %p1086 = scmp.le.s32.totalorder 2, %s17
      // Predicated region
      $region57: #{tpu_custom_call.1} parent=5 // pred_check
        %p1087 = pneg %p1086
      $region58: #{tpu_custom_call.1} parent=5 // pred_check_branch
        %1089 = sbr.rel (%p1087) target = $region60
      $region59: #{tpu_custom_call.1} parent=5 // pred_region
        %s1090 = ssub.s32 %s17, 2
        // Predicated region
        $region61: #{tpu_custom_call.1} parent=59 // pred_check
          %p1091 = pneg %p198
        $region62: #{tpu_custom_call.1} parent=59 // pred_check_branch
          %1093 = sbr.rel (%p1091) target = $region64
        $region63: #{tpu_custom_call.1} parent=59 // pred_region
          %s1094 = sand.u32 %s183, 1
          %s1095 = scalar_lea.sflag [#allocation4], %s1094
          %s1096 = sand.u32 %s183, 1
          %s1097 = smul.addr %s1096, 4
          %s1098 = scalar_lea.vmem [#allocation5], %s1097
          %1099 = dma.done %s1095, 64
        $region64: #{tpu_custom_call.1} parent=59 // pred_fallthru
          _
      $region60: #{tpu_custom_call.1} parent=5 // pred_fallthru
        _
    $region6: #{tpu_custom_call.1} parent=1 // loop_footer
      %s21 = sadd.s32 1, %s17
    $region7: #{tpu_custom_call.1} parent=1 // loop_footer_branch
      %16 = sbr.rel target = $region3
    $region8: #{tpu_custom_call.1} parent=1 // loop_exit
      _
    %1100 = vsyncpa [#allocation3], 1
    %s1101 = scalar_lea.sflag [#allocation3], 1
    %1102 = vsyncpa %s1101, 1
    %1103 = vsyncpa [#allocation4], 1
    %s1104 = scalar_lea.sflag [#allocation4], 1
    %1105 = vsyncpa %s1104, 1

</llo_original>
